<compile_context>
chip_gen: v7x
topology: tpu7x:2x2x1
jax: 0.10.0
libtpu: 0.0.40
codegen_flags: <defaults>
</compile_context>

<pallas_src>
import jax
import jax.numpy as jnp
from jax.experimental import pallas as pl
from jax.experimental.pallas import tpu as pltpu

_EPS = 1e-12  # F.normalize default eps


def _round_up(v, m):
  return -(-v // m) * m


def _asin01(x, x2):
  """float32 arcsin for x = sqrt(x2), x in [0, 1] (musl asinf rational approx).

  Shares a single rational-correction evaluation between the |x| < 0.5 and
  |x| >= 0.5 branches and replaces the divide with an EUP reciprocal plus one
  Newton step (full f32 accuracy).  Built only from mul/add/sqrt/where/recip
  so it is guaranteed to lower in Mosaic.
  """
  pio2 = 1.5707963267948966
  pS0, pS1, pS2 = 1.6666586697e-01, -4.2743422091e-02, -8.6563630030e-03
  qS1 = -7.0662963390e-01

  small_branch = x2 < 0.25
  z = jnp.where(small_branch, x2, (1.0 - x) * 0.5)   # z in [0, 0.25]
  num = z * (pS0 + z * (pS1 + z * pS2))
  den = 1.0 + z * qS1                                # den in [~0.82, 1]
  inv = pl.reciprocal(den, approx=True)
  inv = inv * (2.0 - den * inv)                      # one Newton step
  r = num * inv
  s = jnp.sqrt(z)                                    # only used by big branch
  small = x + x * r                                  # |x| <  0.5
  big = pio2 - 2.0 * (s + s * r)                     # 0.5 <= |x| <= 1
  return jnp.where(small_branch, small, big)


def _choose_block_n(n, l_levels, block_n=None, cap=1024):
  """Tile along N: multiple of 8, capped, and >=2 tiles for L==1 when possible
  so the BlockSpec pipeline overlaps DMA with compute."""
  n8 = _round_up(max(n, 1), 8)
  if block_n is not None:
    return max(8, min(_round_up(block_n, 8), n8))
  if l_levels == 1 and n8 >= 16:
    return min(cap, _round_up(-(-n8 // 2), 8))
  return min(cap, n8)


def _prompt_kernel(x_ref, en_ref, o_ref):
  x = x_ref[0].astype(jnp.float32)          # (TN, D) raw cutout embeddings
  en = en_ref[0]                            # (E, D)  pre-normalized prompts

  # F.normalize(dim=-1): v / max(||v||, eps) == v * rsqrt(max(||v||^2, eps^2))
  xn = x * jax.lax.rsqrt(
      jnp.maximum(jnp.sum(x * x, axis=-1, keepdims=True), _EPS * _EPS))

  # Pairwise <en, xn> on the MXU, contracting D of both -> (E, TN):
  # lane-dense in N, E on sublanes.
  g = jax.lax.dot_general(en, xn, (((1,), (1,)), ((), ())),
                          preferred_element_type=jnp.float32)

  # ||xn - en||^2 / 4 = 0.5 - 0.5*<xn,en>; clamp so f32 rounding near
  # identical/antipodal vectors cannot push the asin argument outside [0, 1].
  h2 = jnp.clip(0.5 - 0.5 * g, 0.0, 1.0)    # (d/2)^2 in [0, 1]
  a = _asin01(jnp.sqrt(h2), h2)             # asin(d/2)

  # Per-column (per-cutout) partial sum over E: sublane reduce only, then a
  # lane-dense (1, TN) store.  All weight/mean scaling happens in the wrapper.
  psum = jnp.sum(a * a, axis=0, keepdims=True)          # (1, TN)
  o_ref[...] = psum.reshape(o_ref.shape)


def _prompt_pallas(x3, e3, weight, block_n=None):
  """x3: (L, N, D) cutout embeddings, e3: (L, E, D) prompt embeddings.
  Returns the scalar loss."""
  l_levels, n, d = x3.shape
  _, e, _ = e3.shape

  tn = _choose_block_n(n, l_levels, block_n)
  n_pad = _round_up(n, tn)
  n_tiles = n_pad // tn
  if n_pad != n:
    # Zero-padded rows produce finite garbage in their own output columns,
    # which are sliced off below before the final sum.
    x3 = jnp.pad(x3, ((0, 0), (0, n_pad - n), (0, 0)))

  # Hoist prompt-embedding normalization out of the kernel: done once here
  # instead of once per N tile per level.
  e32 = e3.astype(jnp.float32)
  e3n = e32 * jax.lax.rsqrt(
      jnp.maximum(jnp.sum(e32 * e32, axis=-1, keepdims=True), _EPS * _EPS))

  out = pl.pallas_call(
      _prompt_kernel,
      out_shape=jax.ShapeDtypeStruct((l_levels, n_tiles, 1, tn), jnp.float32),
      grid=(l_levels, n_tiles),
      in_specs=[
          pl.BlockSpec((1, tn, d), lambda li, ni: (li, ni, 0)),   # x tile
          pl.BlockSpec((1, e, d), lambda li, ni: (li, 0, 0)),     # embeds (per level)
      ],
      out_specs=pl.BlockSpec((1, 1, 1, tn), lambda li, ni: (li, ni, 0, 0)),
      compiler_params=pltpu.CompilerParams(
          dimension_semantics=("parallel", "parallel")),
      cost_estimate=pl.CostEstimate(
          flops=2 * l_levels * n_pad * e * d + 40 * l_levels * n_pad * e,
          transcendentals=l_levels * n_pad * (2 * e + 2),
          bytes_accessed=4 * l_levels * (n_pad * d + e * d + n_pad)),
  )(x3, e3n)

  # loss = |w| * mean(2*asin(d/2)^2 * sign(w)) == w * (2/(L*N*E)) * sum(asin^2)
  partials = out.reshape(l_levels, n_pad)[:, :n]
  scale = 2.0 / float(l_levels * n * e)
  return jnp.sum(partials) * (jnp.float32(weight) * jnp.float32(scale))


def prompt_forward(inp, embed, weight=1.0, block_n=None):
  """JAX/Pallas equivalent of Prompt(embed, weight).forward(inp).

  inp:   (A, B, D) float32   (A groups of B cutout embeddings)
  embed: (E0, E1, D) float32 (buffer registered in __init__)
  Returns a scalar float32 loss.
  """
  # TODO(synk): ReplaceGrad only alters the backward pass (sum_to_size of the
  # grad); forward is identity, so no custom_vjp is implemented here.
  if embed.shape[0] == 1:
    # Main branch: input flattened to (A*B, D), single prompt level.
    x3 = inp.reshape(1, inp.shape[0] * inp.shape[1], inp.shape[2])
    e3 = embed
  else:
    # Multi-level branch: level i of input pairs with level i of embed.
    # mean over the concatenated per-level dists == global sum / (L*B*E1),
    # so one kernel with a level grid axis covers both branches.
    x3 = inp
    e3 = embed
  return _prompt_pallas(x3, e3, weight, block_n=block_n)


def prompt_reference(inp, embed, weight=1.0):
  """Pure-JAX transcription of the PyTorch forward, for verification."""
  def normalize(v):
    return v / jnp.maximum(jnp.linalg.norm(v, axis=-1, keepdims=True), _EPS)

  input_normed = normalize(inp[:, :, None, :])     # (A, B, 1, D)
  embed_normed = normalize(embed[:, None, :, :])   # (E0, 1, E1, D)
  w = jnp.float32(weight)
  if embed.shape[0] != 1:
    ds = []
    for i in range(embed.shape[0]):
      dist = jnp.linalg.norm(input_normed[i] - embed_normed[i], axis=2)
      ds.append(2.0 * jnp.arcsin(dist / 2.0) ** 2)
    dists = jnp.concatenate(ds, axis=0) * jnp.sign(w)
  else:
    en = embed_normed[:, 0]                                      # (1, E1, D)
    xn = input_normed.reshape(inp.shape[0] * inp.shape[1], 1, -1)
    dist = jnp.linalg.norm(xn - en, axis=2)
    dists = 2.0 * jnp.arcsin(dist / 2.0) ** 2 * jnp.sign(w)
  return jnp.abs(w) * jnp.mean(dists)


if __name__ == "__main__":
  key = jax.random.PRNGKey(0)
  k1, k2, k3, k4, k5, k6, k7 = jax.random.split(key, 7)

  # Test 1: main branch (embed.shape[0] == 1). A=2 groups of B=8 cutout
  # embeddings of dim D=32; single-level bank of E=4 prompt embeddings.
  A, B, E, D = 2, 8, 4, 32
  inp1 = jax.random.normal(k1, (A, B, D), dtype=jnp.float32)
  emb1 = jax.random.normal(k2, (1, E, D), dtype=jnp.float32)
  out1 = jax.block_until_ready(prompt_forward(inp1, emb1, 1.0))
  ref1 = prompt_reference(inp1, emb1, 1.0)
  assert jnp.allclose(out1, ref1, atol=1e-5, rtol=1e-5), (float(out1), float(ref1))

  # Test 2: multi-level branch (embed.shape[0] != 1), negative weight.
  L = 2
  inp2 = jax.random.normal(k3, (L, B, D), dtype=jnp.float32)
  emb2 = jax.random.normal(k4, (L, E, D), dtype=jnp.float32)
  out2 = jax.block_until_ready(prompt_forward(inp2, emb2, -0.5))
  ref2 = prompt_reference(inp2, emb2, -0.5)
  assert jnp.allclose(out2, ref2, atol=1e-5, rtol=1e-5), (float(out2), float(ref2))

  # Test 3: exercises the tiled / pipelined N path (grid > 1 along N, lane
  # aligned D=128).  N = 4*64 = 256, block_n = 64 -> 4 grid steps.
  A3, B3, E3, D3 = 4, 64, 8, 128
  inp3 = jax.random.normal(k5, (A3, B3, D3), dtype=jnp.float32)
  emb3 = jax.random.normal(k6, (1, E3, D3), dtype=jnp.float32)
  out3 = jax.block_until_ready(prompt_forward(inp3, emb3, 2.0, block_n=64))
  ref3 = prompt_reference(inp3, emb3, 2.0)
  assert jnp.allclose(out3, ref3, atol=1e-5, rtol=1e-5), (float(out3), float(ref3))

  # Test 4: N not a multiple of the tile (N = 3*5 = 15) -> exercises the
  # zero-pad + slice-off path.
  inp4 = jax.random.normal(k7, (3, 5, D), dtype=jnp.float32)
  out4 = jax.block_until_ready(prompt_forward(inp4, emb1, 0.75))
  ref4 = prompt_reference(inp4, emb1, 0.75)
  assert jnp.allclose(out4, ref4, atol=1e-5, rtol=1e-5), (float(out4), float(ref4))

  print("KERNEL_OK")
</pallas_src>

<mosaic_0001>
module attributes {stable_mosaic.version = 11 : i64} {
  func.func @_prompt_kernel(%arg0: i32, %arg1: i32, %arg2: memref<1x8x32xf32, #tpu.memory_space<vmem>>, %arg3: memref<1x4x32xf32, #tpu.memory_space<vmem>>, %arg4: memref<1x1x1x8xf32, #tpu.memory_space<vmem>>) attributes {dimension_semantics = [#tpu.dimension_semantics<parallel>, #tpu.dimension_semantics<parallel>], iteration_bounds = array<i64: 1, 2>, scalar_prefetch = 0 : i64, scratch_operands = 0 : i64, tpu.core_type = #tpu.core_type<tc>, window_params = [{transform_indices = @transform_0, window_bounds = array<i64: 1, 8, 32>}, {transform_indices = @transform_1, window_bounds = array<i64: 1, 4, 32>}, {transform_indices = @transform_2, window_bounds = array<i64: 1, 1, 1, 8>}]} {
    %c0 = arith.constant 0 : index
    %c0_0 = arith.constant 0 : index
    %c0_1 = arith.constant 0 : index
    %0 = vector.load %arg2[%c0, %c0_0, %c0_1] : memref<1x8x32xf32, #tpu.memory_space<vmem>>, vector<1x8x32xf32>
    %1 = vector.shape_cast %0 : vector<1x8x32xf32> to vector<8x32xf32>
    %c0_2 = arith.constant 0 : index
    %c0_3 = arith.constant 0 : index
    %c0_4 = arith.constant 0 : index
    %2 = vector.load %arg3[%c0_2, %c0_3, %c0_4] : memref<1x4x32xf32, #tpu.memory_space<vmem>>, vector<1x4x32xf32>
    %3 = vector.shape_cast %2 : vector<1x4x32xf32> to vector<4x32xf32>
    %4 = arith.mulf %1, %1 : vector<8x32xf32>
    %cst = arith.constant dense<0.000000e+00> : vector<8xf32>
    %5 = vector.multi_reduction <add>, %4, %cst [1] : vector<8x32xf32> to vector<8xf32>
    %6 = vector.shape_cast %5 : vector<8xf32> to vector<8x1xf32>
    %cst_5 = arith.constant 1.000000e-24 : f32
    %7 = vector.broadcast %cst_5 : f32 to vector<8x1xf32>
    %8 = arith.maximumf %6, %7 : vector<8x1xf32>
    %9 = math.rsqrt %8 : vector<8x1xf32>
    %10 = vector.broadcast %9 : vector<8x1xf32> to vector<8x32xf32>
    %11 = arith.mulf %1, %10 : vector<8x32xf32>
    %cst_6 = arith.constant dense<0.000000e+00> : vector<4x8xf32>
    %12 = tpu.matmul %3, %11, %cst_6 {dimension_numbers = #tpu.dot_dimension_numbers<[1], [1], [0], [0], [0, 0, 1, 0], [], []>} : vector<4x32xf32>, vector<8x32xf32>, vector<4x8xf32> -> vector<4x8xf32>
    %cst_7 = arith.constant 5.000000e-01 : f32
    %13 = vector.broadcast %cst_7 : f32 to vector<4x8xf32>
    %14 = arith.mulf %13, %12 : vector<4x8xf32>
    %cst_8 = arith.constant 5.000000e-01 : f32
    %15 = vector.broadcast %cst_8 : f32 to vector<4x8xf32>
    %16 = arith.subf %15, %14 : vector<4x8xf32>
    %cst_9 = arith.constant 0.000000e+00 : f32
    %cst_10 = arith.constant 1.000000e+00 : f32
    %17 = vector.broadcast %cst_9 : f32 to vector<4x8xf32>
    %18 = arith.maximumf %17, %16 : vector<4x8xf32>
    %19 = vector.broadcast %cst_10 : f32 to vector<4x8xf32>
    %20 = arith.minimumf %19, %18 : vector<4x8xf32>
    %21 = math.sqrt %20 : vector<4x8xf32>
    %cst_11 = arith.constant 2.500000e-01 : f32
    %22 = vector.broadcast %cst_11 : f32 to vector<4x8xf32>
    %23 = arith.cmpf olt, %20, %22 : vector<4x8xf32>
    %cst_12 = arith.constant 1.000000e+00 : f32
    %24 = vector.broadcast %cst_12 : f32 to vector<4x8xf32>
    %25 = arith.subf %24, %21 : vector<4x8xf32>
    %cst_13 = arith.constant 5.000000e-01 : f32
    %26 = vector.broadcast %cst_13 : f32 to vector<4x8xf32>
    %27 = arith.mulf %25, %26 : vector<4x8xf32>
    %28 = arith.select %23, %20, %27 : vector<4x8xi1>, vector<4x8xf32>
    %cst_14 = arith.constant -0.008656363 : f32
    %29 = vector.broadcast %cst_14 : f32 to vector<4x8xf32>
    %30 = arith.mulf %28, %29 : vector<4x8xf32>
    %cst_15 = arith.constant -0.0427434221 : f32
    %31 = vector.broadcast %cst_15 : f32 to vector<4x8xf32>
    %32 = arith.addf %31, %30 : vector<4x8xf32>
    %33 = arith.mulf %28, %32 : vector<4x8xf32>
    %cst_16 = arith.constant 0.166665867 : f32
    %34 = vector.broadcast %cst_16 : f32 to vector<4x8xf32>
    %35 = arith.addf %34, %33 : vector<4x8xf32>
    %36 = arith.mulf %28, %35 : vector<4x8xf32>
    %cst_17 = arith.constant -0.706629634 : f32
    %37 = vector.broadcast %cst_17 : f32 to vector<4x8xf32>
    %38 = arith.mulf %28, %37 : vector<4x8xf32>
    %cst_18 = arith.constant 1.000000e+00 : f32
    %39 = vector.broadcast %cst_18 : f32 to vector<4x8xf32>
    %40 = arith.addf %39, %38 : vector<4x8xf32>
    %41 = tpu.reciprocal %40 {approx = true} : vector<4x8xf32> -> vector<4x8xf32>
    %42 = arith.mulf %40, %41 : vector<4x8xf32>
    %cst_19 = arith.constant 2.000000e+00 : f32
    %43 = vector.broadcast %cst_19 : f32 to vector<4x8xf32>
    %44 = arith.subf %43, %42 : vector<4x8xf32>
    %45 = arith.mulf %41, %44 : vector<4x8xf32>
    %46 = arith.mulf %36, %45 : vector<4x8xf32>
    %47 = math.sqrt %28 : vector<4x8xf32>
    %48 = arith.mulf %21, %46 : vector<4x8xf32>
    %49 = arith.addf %21, %48 : vector<4x8xf32>
    %50 = arith.mulf %47, %46 : vector<4x8xf32>
    %51 = arith.addf %47, %50 : vector<4x8xf32>
    %cst_20 = arith.constant 2.000000e+00 : f32
    %52 = vector.broadcast %cst_20 : f32 to vector<4x8xf32>
    %53 = arith.mulf %52, %51 : vector<4x8xf32>
    %cst_21 = arith.constant 1.57079637 : f32
    %54 = vector.broadcast %cst_21 : f32 to vector<4x8xf32>
    %55 = arith.subf %54, %53 : vector<4x8xf32>
    %56 = arith.select %23, %49, %55 : vector<4x8xi1>, vector<4x8xf32>
    %57 = arith.mulf %56, %56 : vector<4x8xf32>
    %cst_22 = arith.constant dense<0.000000e+00> : vector<8xf32>
    %58 = vector.multi_reduction <add>, %57, %cst_22 [0] : vector<4x8xf32> to vector<8xf32>
    %59 = vector.shape_cast %58 : vector<8xf32> to vector<1x8xf32>
    %60 = vector.shape_cast %59 : vector<1x8xf32> to vector<1x1x1x8xf32>
    %c0_23 = arith.constant 0 : index
    %c0_24 = arith.constant 0 : index
    %c0_25 = arith.constant 0 : index
    %c0_26 = arith.constant 0 : index
    %61 = vector.load %arg4[%c0_23, %c0_24, %c0_25, %c0_26] : memref<1x1x1x8xf32, #tpu.memory_space<vmem>>, vector<1x1x1x8xf32>
    tpu.vector_store %arg4[%c0_23, %c0_24, %c0_25, %c0_26], %60 {strides = array<i32>} : memref<1x1x1x8xf32, #tpu.memory_space<vmem>>, vector<1x1x1x8xf32>,
    return
  }
  func.func @transform_0(%arg0: i32, %arg1: i32) -> (i32, i32, i32) {
    %c0_i32 = arith.constant 0 : i32
    %c0_i32_0 = arith.constant 0 : i32
    return %arg0, %arg1, %c0_i32 : i32, i32, i32
  }
  func.func @transform_1(%arg0: i32, %arg1: i32) -> (i32, i32, i32) {
    %c0_i32 = arith.constant 0 : i32
    %c0_i32_0 = arith.constant 0 : i32
    %c0_i32_1 = arith.constant 0 : i32
    return %arg0, %c0_i32, %c0_i32_0 : i32, i32, i32
  }
  func.func @transform_2(%arg0: i32, %arg1: i32) -> (i32, i32, i32, i32) {
    %c0_i32 = arith.constant 0 : i32
    %c0_i32_0 = arith.constant 0 : i32
    %c0_i32_1 = arith.constant 0 : i32
    return %arg0, %arg1, %c0_i32, %c0_i32_0 : i32, i32, i32, i32
  }
}

</mosaic_0001>

<llo_original>
// kernel: tpu_custom_call.1
$region0: #{tpu_custom_call.1}
  #allocation0 [shape = 'u32[]', space=smem, size = 0x4, offset = 0x4, fixed_abs, tag = 'smem constant byte address 0x4 - core index']
  #allocation1 [shape = 'u32[144,128]{1,0:T(1,128)}', space=vmem, size = 0x12000, scoped, tag = 'internal scratch']
  %s0 = inlined_call_operand.hbm [shape: f32[1,16,32], index: 0, kind: input, shape index: {}]
  %s1 = inlined_call_operand.hbm [shape: f32[1,4,32], index: 1, kind: input, shape index: {}]
  %s2 = inlined_call_operand.hbm [shape: f32[1,2,1,8], index: 2, kind: output, shape index: {}]
  %s3 = sld [smem:[#allocation0]]
  $region49: #{tpu_custom_call.1} parent=0
    _
  %s5 = ssub.s32 1, %s3
  %s6 = scalar_select 0, %s5, %s3
  $region1: #{tpu_custom_call.1} parent=0
    #allocation2 [shape = 'u8[8192]{0}', space=vmem, size = 0x2000, scoped, tag = 'input window, operand 0']
    #allocation3 [shape = 's32[2]{0}', space=sflag, size = 0x8, scoped, tag = 'scoped memory for tpu_custom_call.1']
    #allocation4 [shape = 's32[2]{0}', space=sflag, size = 0x8, scoped, tag = 'scoped memory for tpu_custom_call.1']
    #allocation5 [shape = 'u8[2048]{0}', space=vmem, size = 0x800, scoped, tag = 'input window, operand 1, single buffered']
    #allocation6 [shape = 's32[1]{0}', space=sflag, size = 0x4, scoped, tag = 'scoped memory for tpu_custom_call.1']
    #allocation7 [shape = 'u8[1024]{0}', space=vmem, size = 0x400, scoped, tag = 'output window, operand 0']
    %7 = vsyncpa [#allocation3], 0
    %s8 = scalar_lea.sflag [#allocation3], 1
    %9 = vsyncpa %s8, 0
    %10 = vsyncpa [#allocation6], 0
    %11 = vsyncpa [#allocation4], 0
    %s12 = scalar_lea.sflag [#allocation4], 1
    %13 = vsyncpa %s12, 0
    loop: start=0, step=1, limit=4
    $region2: #{tpu_custom_call.1} parent=1 // loop_pre_header
      _
    $region3: #{tpu_custom_call.1} parent=1 // loop_header
      %s15 = sphi 0, %s19
      %p16 = scmp.ge.s32.totalorder %s15, 4
      %s22 = sphi 0, %s34
      %s23 = sphi 0, %s30
      %s24 = sphi 0, %s22
      %s25 = sphi 0, %s23
      %s26 = sphi 0, %s24
      %s27 = sphi 0, %s25
      %s39 = sphi 0, %s41
      %s42 = sphi 0, %s39
      %s43 = sphi 0, %s42
      %s59 = sphi 0, %s43
      %s65 = sphi 0, %s67
      %s68 = sphi 0, %s65
      %s69 = sphi 0, %s68
      %s85 = sphi 0, %s69
      %s93 = sphi 0, %s95
      %s96 = sphi 0, %s93
      %s97 = sphi 0, %s96
      %s113 = sphi 0, %s97
    $region4: #{tpu_custom_call.1} parent=1 // loop_header_branch
      %18 = sbr.rel (%p16) target = $region8
    $region5: #{tpu_custom_call.1} parent=1 // loop_body
      %s20 = ssub.s32 %s15, 1
      %s21 = ssub.s32 %s15, 2
      %s28 = sadd.s32 1, %s23
      %p29 = scmp.ge.s32.totalorder %s28, 2
      %s30 = scalar_select %p29, 0, %s28
      %s31 = sadd.s32 1, %s22
      %s32 = scalar_select %p29, %s31, %s22
      %p33 = scmp.ge.s32.totalorder %s32, 1
      %s34 = scalar_select %p33, 0, %s32
      %s35 = ssub.s32 %s22, %s34
      %s36 = ssub.s32 %s23, %s30
      %s37 = sor.u32 %s35, %s36
      %p38 = scmp.eq.s32.totalorder %s37, 0
      %s40 = sadd.s32 %s39, 1
      %s41 = scalar_select %p38, %s39, %s40
      %p44 = pneg %p38
      %p45 = scmp.eq.s32.totalorder %s15, 1
      %p46 = por %p44, %p45
      %p47 = scmp.ne.s32.totalorder %s39, %s42
      %p48 = scmp.eq.s32.totalorder %s15, 0
      %p49 = por %p47, %p48
      %p50 = scmp.ne.s32.totalorder %s39, %s42
      %p51 = scmp.eq.s32.totalorder %s20, 1
      %p52 = por %p50, %p51
      %p53 = scmp.ne.s32.totalorder %s42, %s43
      %p54 = scmp.eq.s32.totalorder %s20, 0
      %p55 = por %p53, %p54
      %p56 = scmp.ne.s32.totalorder %s42, %s43
      %p57 = scmp.eq.s32.totalorder %s21, 1
      %p58 = por %p56, %p57
      %p60 = scmp.ne.s32.totalorder %s43, %s59
      %p61 = scmp.eq.s32.totalorder %s21, 0
      %p62 = por %p60, %p61
      %s63 = ssub.s32 %s22, %s34
      %p64 = scmp.eq.s32.totalorder %s63, 0
      %s66 = sadd.s32 %s65, 1
      %s67 = scalar_select %p64, %s65, %s66
      %p70 = pneg %p64
      %p71 = scmp.eq.s32.totalorder %s15, 1
      %p72 = por %p70, %p71
      %p73 = scmp.ne.s32.totalorder %s65, %s68
      %p74 = scmp.eq.s32.totalorder %s15, 0
      %p75 = por %p73, %p74
      %p76 = scmp.ne.s32.totalorder %s65, %s68
      %p77 = scmp.eq.s32.totalorder %s20, 1
      %p78 = por %p76, %p77
      %p79 = scmp.ne.s32.totalorder %s68, %s69
      %p80 = scmp.eq.s32.totalorder %s20, 0
      %p81 = por %p79, %p80
      %p82 = scmp.ne.s32.totalorder %s68, %s69
      %p83 = scmp.eq.s32.totalorder %s21, 1
      %p84 = por %p82, %p83
      %p86 = scmp.ne.s32.totalorder %s69, %s85
      %p87 = scmp.eq.s32.totalorder %s21, 0
      %p88 = por %p86, %p87
      %s89 = ssub.s32 %s22, %s34
      %s90 = ssub.s32 %s23, %s30
      %s91 = sor.u32 %s89, %s90
      %p92 = scmp.eq.s32.totalorder %s91, 0
      %s94 = sadd.s32 %s93, 1
      %s95 = scalar_select %p92, %s93, %s94
      %p98 = pneg %p92
      %p99 = scmp.eq.s32.totalorder %s15, 1
      %p100 = por %p98, %p99
      %p101 = scmp.ne.s32.totalorder %s93, %s96
      %p102 = scmp.eq.s32.totalorder %s15, 0
      %p103 = por %p101, %p102
      %p104 = scmp.ne.s32.totalorder %s93, %s96
      %p105 = scmp.eq.s32.totalorder %s20, 1
      %p106 = por %p104, %p105
      %p107 = scmp.ne.s32.totalorder %s96, %s97
      %p108 = scmp.eq.s32.totalorder %s20, 0
      %p109 = por %p107, %p108
      %p110 = scmp.ne.s32.totalorder %s96, %s97
      %p111 = scmp.eq.s32.totalorder %s21, 1
      %p112 = por %p110, %p111
      %p114 = scmp.ne.s32.totalorder %s97, %s113
      %p115 = scmp.eq.s32.totalorder %s21, 0
      %p116 = por %p114, %p115
      %p117 = scmp.le.s32.totalorder 1, %s15
      %p118 = scmp.lt.s32.totalorder %s15, 3
      %p119 = pnand %p117, %p118
      %p120 = pneg %p119
      // Predicated region
      $region9: #{tpu_custom_call.1} parent=5 // pred_check
        _
      $region10: #{tpu_custom_call.1} parent=5 // pred_check_branch
        %122 = sbr.rel (%p119) target = $region12
      $region11: #{tpu_custom_call.1} parent=5 // pred_region
        %s123 = ssub.s32 %s15, 1
        // Predicated region
        $region13: #{tpu_custom_call.1} parent=11 // pred_check
          %p124 = pneg %p81
        $region14: #{tpu_custom_call.1} parent=11 // pred_check_branch
          %126 = sbr.rel (%p124) target = $region16
        $region15: #{tpu_custom_call.1} parent=11 // pred_region
          %s128 = ssub.s32 64, 64
          %129 = vsyncadd [#allocation6], %s128
          %s130 = smul.addr %s24, 64
          %s131 = scalar_lea.hbm %s1, %s130
          %s133 = sshll.u32 [#allocation5], 4
          %s134 = int_to_ptr.vmem [resolvable:$true] %s133
          %136 = dma.hbm_to_vmem [thread:$0]  %s131, 64, %s134, [#allocation6]
        $region16: #{tpu_custom_call.1} parent=11 // pred_fallthru
          _
      $region12: #{tpu_custom_call.1} parent=5 // pred_fallthru
        _
      %p137 = scmp.lt.s32.totalorder %s15, 2
      // Predicated region
      $region17: #{tpu_custom_call.1} parent=5 // pred_check
        %p138 = pneg %p137
      $region18: #{tpu_custom_call.1} parent=5 // pred_check_branch
        %140 = sbr.rel (%p138) target = $region20
      $region19: #{tpu_custom_call.1} parent=5 // pred_region
        // Predicated region
        $region21: #{tpu_custom_call.1} parent=19 // pred_check
          %p141 = pneg %p49
        $region22: #{tpu_custom_call.1} parent=19 // pred_check_branch
          %143 = sbr.rel (%p141) target = $region24
        $region23: #{tpu_custom_call.1} parent=19 // pred_region
          %s144 = sand.u32 %s39, 1
          %s145 = scalar_lea.sflag [#allocation3], %s144
          %s146 = sand.u32 %s39, 1
          %s147 = smul.addr %s146, 8
          %s148 = scalar_lea.vmem [#allocation2], %s147
          %s150 = ssub.s32 128, 128
          %151 = vsyncadd %s145, %s150
          %s152 = smul.addr %s22, 2
          %s153 = sadd.s32 %s23, %s152
          %s154 = smul.addr %s153, 128
          %s155 = scalar_lea.hbm %s0, %s154
          %s157 = sshll.u32 %s148, 4
          %s158 = int_to_ptr.vmem [resolvable:$true] %s157
          %160 = dma.hbm_to_vmem [thread:$0]  %s155, 128, %s158, %s145
        $region24: #{tpu_custom_call.1} parent=19 // pred_fallthru
          _
      $region20: #{tpu_custom_call.1} parent=5 // pred_fallthru
        _
      %p161 = scmp.le.s32.totalorder 1, %s15
      %p162 = scmp.lt.s32.totalorder %s15, 3
      %p163 = pnand %p161, %p162
      %p164 = pneg %p163
      // Predicated region
      $region25: #{tpu_custom_call.1} parent=5 // pred_check
        _
      $region26: #{tpu_custom_call.1} parent=5 // pred_check_branch
        %166 = sbr.rel (%p163) target = $region28
      $region27: #{tpu_custom_call.1} parent=5 // pred_region
        %s167 = ssub.s32 %s15, 1
        %s168 = sand.u32 %s42, 1
        %s169 = scalar_lea.sflag [#allocation3], %s168
        %s170 = sand.u32 %s42, 1
        %s171 = smul.addr %s170, 8
        %s172 = scalar_lea.vmem [#allocation2], %s171
        // Predicated region
        $region29: #{tpu_custom_call.1} parent=27 // pred_check
          %p173 = pneg %p55
        $region30: #{tpu_custom_call.1} parent=27 // pred_check_branch
          %175 = sbr.rel (%p173) target = $region32
        $region31: #{tpu_custom_call.1} parent=27 // pred_region
          %176 = dma.done %s169, 128
        $region32: #{tpu_custom_call.1} parent=27 // pred_fallthru
          _
        // Predicated region
        $region33: #{tpu_custom_call.1} parent=27 // pred_check
          %p177 = pneg %p81
        $region34: #{tpu_custom_call.1} parent=27 // pred_check_branch
          %179 = sbr.rel (%p177) target = $region36
        $region35: #{tpu_custom_call.1} parent=27 // pred_region
          %180 = dma.done [#allocation6], 64
        $region36: #{tpu_custom_call.1} parent=27 // pred_fallthru
          _
        %s181 = sand.u32 %s42, 1
        %s182 = scalar_lea.sflag [#allocation3], %s181
        %s183 = sand.u32 %s42, 1
        %s184 = smul.addr %s183, 8
        %s185 = scalar_lea.vmem [#allocation2], %s184
        %p186 = pneg %p55
        %p187 = pneg %p52
        %p188 = pneg %p81
        %p189 = pneg %p78
        %p190 = pneg %p109
        %p191 = pneg %p106
        %s192 = sand.u32 %s96, 1
        %s193 = scalar_lea.sflag [#allocation4], %s192
        %s194 = sand.u32 %s96, 1
        %s195 = scalar_lea.vmem [#allocation7], %s194
        %v196 = vld [vmem:[%s172] sm:$0xff]
        %v197 = vld [vmem:[#allocation5] sm:$0xf]
        %v198 = vmul.f32 %v196, %v196
        %vm199 = vcmask 261120
        %v200 = vsel %vm199, %v198, 0.0
        %201 = vadd.xlane.f32.xlu0 %v200
        %v202 = vpop.xlane.xlu0 %201
        %v203 = vmax.f32 %v202, 1e-24
        %v204 = vrsqrt.pop %v203
        %v205 = vmul.f32 %v196, %v204
        %v207 = vsel %vm199, %v197, 0
        %v210 = vsel %vm199, %v205, 0
        %212 = vmatprep.subr.mxu0 0.0
        %213 = vmatpush1.xpose.msra.mxu0 %v210
        %214 = vmatprep.subr.mxu0 0.0
        %215 = vmatpush1.xpose.msra.mxu0 0.0
        %216 = vmatprep.subr.mxu0 0.0
        %217 = vmatpush1.xpose.msra.mxu0 0.0
        %218 = vmatprep.subr.mxu0 0.0
        %219 = vmatpush1.xpose.msra.mxu0 0.0
        %220 = vmatprep.subr.mxu0 0.0
        %221 = vmatpush1.xpose.msra.mxu0 0.0
        %222 = vmatprep.subr.mxu0 0.0
        %223 = vmatpush1.xpose.msra.mxu0 0.0
        %224 = vmatprep.subr.mxu0 0.0
        %225 = vmatpush1.xpose.msra.mxu0 0.0
        %226 = vmatprep.subr.mxu0 0.0
        %227 = vmatpush1.xpose.msra.mxu0 0.0
        %228 = vmatprep.subr.mxu0 0.0
        %229 = vmatpush1.xpose.msra.mxu0 0.0
        %230 = vmatprep.subr.mxu0 0.0
        %231 = vmatpush1.xpose.msra.mxu0 0.0
        %232 = vmatprep.subr.mxu0 0.0
        %233 = vmatpush1.xpose.msra.mxu0 0.0
        %234 = vmatprep.subr.mxu0 0.0
        %235 = vmatpush1.xpose.msra.mxu0 0.0
        %236 = vmatprep.subr.mxu0 0.0
        %237 = vmatpush1.xpose.msra.mxu0 0.0
        %238 = vmatprep.subr.mxu0 0.0
        %239 = vmatpush1.xpose.msra.mxu0 0.0
        %240 = vmatprep.subr.mxu0 0.0
        %241 = vmatpush1.xpose.msra.mxu0 0.0
        %242 = vmatprep.subr.mxu0 0.0
        %243 = vmatpush1.xpose.msra.mxu0 0.0
        %244 = vmatprep.subr.mxu0 0.0
        %245 = vmatpush1.xpose.msra.mxu0 0.0
        %246 = vmatprep.subr.mxu0 0.0
        %247 = vmatpush1.xpose.msra.mxu0 0.0
        %248 = vmatprep.subr.mxu0 0.0
        %249 = vmatpush1.xpose.msra.mxu0 0.0
        %250 = vmatprep.subr.mxu0 0.0
        %251 = vmatpush1.xpose.msra.mxu0 0.0
        %252 = vmatprep.subr.mxu0 0.0
        %253 = vmatpush1.xpose.msra.mxu0 0.0
        %254 = vmatprep.subr.mxu0 0.0
        %255 = vmatpush1.xpose.msra.mxu0 0.0
        %256 = vmatprep.subr.mxu0 0.0
        %257 = vmatpush1.xpose.msra.mxu0 0.0
        %258 = vmatprep.subr.mxu0 0.0
        %259 = vmatpush1.xpose.msra.mxu0 0.0
        %260 = vmatprep.subr.mxu0 0.0
        %261 = vmatpush1.xpose.msra.mxu0 0.0
        %262 = vmatprep.subr.mxu0 0.0
        %263 = vmatpush1.xpose.msra.mxu0 0.0
        %264 = vmatprep.subr.mxu0 0.0
        %265 = vmatpush1.xpose.msra.mxu0 0.0
        %266 = vmatprep.subr.mxu0 0.0
        %267 = vmatpush1.xpose.msra.mxu0 0.0
        %268 = vmatprep.subr.mxu0 0.0
        %269 = vmatpush1.xpose.msra.mxu0 0.0
        %270 = vmatprep.subr.mxu0 0.0
        %271 = vmatpush1.xpose.msra.mxu0 0.0
        %272 = vmatprep.subr.mxu0 0.0
        %273 = vmatpush1.xpose.msra.mxu0 0.0
        %274 = vmatprep.subr.mxu0 0.0
        %275 = vmatpush1.xpose.msra.mxu0 0.0
        %276 = vmatprep.mubr.f32.mxu0 0.0
        %277 = vmatmul.mubr.f32.gmra.mrb[0].mxu0 %v207
        %v278 = vpop.f32.mrb[0].mxu0
        %v279 = vadd.f32 0.0, %v278
        %v280 = vpop.f32.mrb[0].mxu0
        %281 = vdwg.mxu0
        %v282 = vmul.f32 %v279, 0.5
        %v283 = vsub.f32 0.5, %v282
        %v284 = vmax.f32 %v283, 0.0
        %v285 = vmin.f32 %v284, 1.0
        %v286 = vrsqrt.pop %v285
        %v287 = vmul.f32 %v285, %v286
        %vm288 = vcmp.eq.f32.partialorder %v285, inf
        %v289 = vsel %vm288, %v285, %v287
        %vm290 = vcmp.eq.f32.partialorder %v285, 0.0
        %v291 = vand.u32 %v285, 2147483648
        %v292 = vsel %vm290, %v291, %v289
        %vm293 = vcmp.lt.f32.partialorder %v285, 0.25
        %v294 = vsub.f32 1.0, %v292
        %v295 = vmul.f32 %v294, 0.5
        %v296 = vsel %vm293, %v285, %v295
        %v297 = vmul.f32 %v296, -0.008656363
        %v298 = vadd.f32 %v297, -0.042743422
        %v299 = vmul.f32 %v296, %v298
        %v300 = vadd.f32 %v299, 0.16666587
        %v301 = vmul.f32 %v296, %v300
        %v302 = vmul.f32 %v296, -0.70662963
        %v303 = vadd.f32 %v302, 1.0
        %v304 = vrcp.pop %v303
        %v305 = vmul.f32 %v303, %v304
        %v306 = vsub.f32 2.0, %v305
        %v307 = vmul.f32 %v304, %v306
        %v308 = vmul.f32 %v301, %v307
        %v309 = vrsqrt.pop %v296
        %v310 = vmul.f32 %v296, %v309
        %vm311 = vcmp.eq.f32.partialorder %v296, inf
        %v312 = vsel %vm311, %v296, %v310
        %vm313 = vcmp.eq.f32.partialorder %v296, 0.0
        %v314 = vand.u32 %v296, 2147483648
        %v315 = vsel %vm313, %v314, %v312
        %v316 = vmul.f32 %v292, %v308
        %v317 = vadd.f32 %v292, %v316
        %v318 = vmul.f32 %v315, %v308
        %v319 = vadd.f32 %v315, %v318
        %v320 = vmul.f32 %v319, 2.0
        %v321 = vsub.f32 1.5707964, %v320
        %v322 = vsel %vm293, %v317, %v321
        %v323 = vmul.f32 %v322, %v322
        %vm324 = vcmask 60416
        %v325 = vsel %vm324, %v323, 0.0
        %v326 = vrot.slane %v325, 4
        %v327 = vadd.f32 %v325, %v326
        %v328 = vrot.slane %v327, 2
        %v329 = vadd.f32 %v327, %v328
        %v330 = vrot.slane %v329, 1
        %v331 = vadd.f32 %v329, %v330
        %vm332 = vcmask 57344
        %333 = vst.msk [vmem:[%s195] sm:$0x1] %vm332, %v331
        %s334 = sand.u32 %s96, 1
        %s335 = scalar_lea.sflag [#allocation4], %s334
        %s336 = sand.u32 %s96, 1
        %s337 = scalar_lea.vmem [#allocation7], %s336
        // Predicated region
        $region37: #{tpu_custom_call.1} parent=27 // pred_check
          %p338 = pneg %p106
        $region38: #{tpu_custom_call.1} parent=27 // pred_check_branch
          %340 = sbr.rel (%p338) target = $region40
        $region39: #{tpu_custom_call.1} parent=27 // pred_region
          %s342 = ssub.s32 16, 16
          %343 = vsyncadd %s335, %s342
          %s344 = smul.addr %s24, 2
          %s345 = sadd.s32 %s25, %s344
          %s346 = smul.addr %s345, 16
          %s347 = scalar_lea.hbm %s2, %s346
          %s349 = sshll.u32 %s337, 4
          %s350 = int_to_ptr.vmem [resolvable:$true] %s349
          %352 = dma.vmem_to_hbm [thread:$0]  %s350, 16, %s347, %s335
        $region40: #{tpu_custom_call.1} parent=27 // pred_fallthru
          _
      $region28: #{tpu_custom_call.1} parent=5 // pred_fallthru
        _
      %p353 = scmp.le.s32.totalorder 2, %s15
      // Predicated region
      $region41: #{tpu_custom_call.1} parent=5 // pred_check
        %p354 = pneg %p353
      $region42: #{tpu_custom_call.1} parent=5 // pred_check_branch
        %356 = sbr.rel (%p354) target = $region44
      $region43: #{tpu_custom_call.1} parent=5 // pred_region
        %s357 = ssub.s32 %s15, 2
        // Predicated region
        $region45: #{tpu_custom_call.1} parent=43 // pred_check
          %p358 = pneg %p112
        $region46: #{tpu_custom_call.1} parent=43 // pred_check_branch
          %360 = sbr.rel (%p358) target = $region48
        $region47: #{tpu_custom_call.1} parent=43 // pred_region
          %s361 = sand.u32 %s97, 1
          %s362 = scalar_lea.sflag [#allocation4], %s361
          %s363 = sand.u32 %s97, 1
          %s364 = scalar_lea.vmem [#allocation7], %s363
          %365 = dma.done %s362, 16
        $region48: #{tpu_custom_call.1} parent=43 // pred_fallthru
          _
      $region44: #{tpu_custom_call.1} parent=5 // pred_fallthru
        _
    $region6: #{tpu_custom_call.1} parent=1 // loop_footer
      %s19 = sadd.s32 1, %s15
    $region7: #{tpu_custom_call.1} parent=1 // loop_footer_branch
      %14 = sbr.rel target = $region3
    $region8: #{tpu_custom_call.1} parent=1 // loop_exit
      _
    %366 = vsyncpa [#allocation3], 1
    %s367 = scalar_lea.sflag [#allocation3], 1
    %368 = vsyncpa %s367, 1
    %369 = vsyncpa [#allocation6], 1
    %370 = vsyncpa [#allocation4], 1
    %s371 = scalar_lea.sflag [#allocation4], 1
    %372 = vsyncpa %s371, 1

</llo_original>
